<compile_context>
chip_gen: v5e
topology: v5e:2x2
jax: 0.10.0
libtpu: 0.0.40
codegen_flags: <defaults>
</compile_context>

<pallas_src>
import functools

import jax
import jax.numpy as jnp
from jax.experimental import pallas as pl
from jax.experimental.pallas import tpu as pltpu

IGNORE_MARGIN = 48  # margin used by compute_confusion_matrix in the reference


def _round_up(x, m):
    return ((x + m - 1) // m) * m


def _choose_tile_l(B, L, out_itemsize):
    # Double-buffered, sublane-padded input blocks (logits padded 3->8 rows,
    # targets 1->8 rows) kept under ~12 MiB so the whole kernel stays inside
    # a 32 MiB scoped-VMEM budget on every generation (v7x physical = 64 MiB).
    vmem_budget = 12 * 1024 * 1024
    per_l = 2 * B * 8 * (out_itemsize + 4)        # 2 bufs * 8 sublanes * bytes
    t = vmem_budget // max(per_l, 1)
    t = int(max(128, min(8192, t)))
    t = (t // 128) * 128
    return int(min(t, _round_up(L, 128)))


def _complete_loss_kernel(outs_ref, tgt_ref, part_ref, acc_ref,
                          *, tile_l, gl_inner, seq_len):
    """Per-tile work.

    acc (SMEM, 8 scalars): 0 CE, 1 squared error, 2 abs error, 3 valid count,
                           4 s11 (target=1 & pred=1), 5 sT (target=1),
                           6 sP (pred=1), 7 sC (margin-valid count).
    """
    n_idx = pl.program_id(0)
    l_idx = pl.program_id(1)

    @pl.when(l_idx == 0)
    def _():
        for k in range(8):
            acc_ref[k] = jnp.float32(0.0)

    # Global element offset of this tile in the ORIGINAL (unpadded) sequence.
    # Overflow tiles of the last parallel chunk get start >= seq_len and are
    # fully masked out below (their clamped re-read data is irrelevant).
    start = (n_idx * gl_inner + l_idx) * tile_l

    tgt = tgt_ref[...].astype(jnp.float32)        # (B, 1, TILE_L)
    o = outs_ref[...]                              # (B, 3, TILE_L), native dtype
    l0 = o[:, 0:1, :].astype(jnp.float32)          # seg logit class 0
    l1 = o[:, 1:2, :].astype(jnp.float32)          # seg logit class 1
    o2 = o[:, 2:3, :].astype(jnp.float32)          # intensity head (MSE)

    # Local lane iota compared against per-step scalar bounds (no global pos
    # plane).  `in_seq` masks the tail of a partial last block (no target pad).
    pos = jax.lax.broadcasted_iota(jnp.int32, tgt.shape, 2)
    in_seq = pos < (seq_len - start)

    # mask (targets != -10) AND mask2 (targets != -0.099 / ignore_index=-100).
    # Exact f32 compare against -0.099 matches torch (targets must stay f32).
    valid = jnp.logical_and(
        jnp.logical_and(tgt != -10.0, tgt != -0.099), in_seq)
    label1 = tgt > 0.0

    # 2-class cross-entropy, binary softplus form:
    #   ce = softplus(-z) with z = logit(correct) - logit(other)
    z = jnp.where(label1, l1 - l0, l0 - l1)
    ce = jnp.maximum(-z, 0.0) + jnp.log1p(jnp.exp(-jnp.abs(z)))
    ce_m = jnp.where(valid, ce, 0.0)

    diff_m = jnp.where(valid, o2 - tgt, 0.0)
    sq_m = diff_m * diff_m
    abs_m = jnp.abs(diff_m)
    vf = valid.astype(jnp.float32)

    # Confusion-matrix marginals over valid positions, excluding a 48-sample
    # margin at both ends of the ORIGINAL sequence.
    # TODO(synk): compute_confusion_matrix is not defined in the reference
    # source; this is the best-effort argmax-vs-target count with a +/-48
    # margin on the original sequence positions.
    margin_ok = jnp.logical_and(pos >= (IGNORE_MARGIN - start),
                                pos < (seq_len - IGNORE_MARGIN - start))
    cb = jnp.logical_and(valid, margin_ok)
    pred1 = l1 > l0
    cf = cb.astype(jnp.float32)
    t1c = jnp.where(jnp.logical_and(cb, label1), 1.0, 0.0)
    p1c = jnp.where(jnp.logical_and(cb, pred1), 1.0, 0.0)
    s11 = t1c * p1c

    # Per-tile XLU reductions accumulated as 8 SMEM scalars (no big VMEM
    # accumulator -> the vector-store slot is no longer hammered every step).
    acc_ref[0] += jnp.sum(ce_m)
    acc_ref[1] += jnp.sum(sq_m)
    acc_ref[2] += jnp.sum(abs_m)
    acc_ref[3] += jnp.sum(vf)
    acc_ref[4] += jnp.sum(s11)
    acc_ref[5] += jnp.sum(t1c)
    acc_ref[6] += jnp.sum(p1c)
    acc_ref[7] += jnp.sum(cf)

    # Lane-dense (8, 128) output slab, written once per parallel chunk.
    # (The concatenate runs only once per chunk -> negligible; kept because it
    # is a known-good lowering pattern.)
    @pl.when(l_idx == pl.num_programs(1) - 1)
    def _():
        rows = [jnp.full((1, 128), acc_ref[k], dtype=jnp.float32)
                for k in range(8)]
        part_ref[0] = jnp.concatenate(rows, axis=0)


def complete_loss(p, outputs, targets):
    """Equivalent of CompleteLoss(mode='CE_MSE').forward(p, outputs, targets).

    Returns (MAE, segmentation_loss, loss, confusion_matrix, MSE).
    """
    B, C, L = outputs.shape
    assert C >= 3, "CE_MSE mode needs at least 3 output heads"

    # Only the 3 heads CE_MSE uses; a no-op when C == 3 (no extra HBM pass).
    outs = outputs if C == 3 else outputs[:, :3, :]
    # Native (B, 1, L) target layout; exact -0.099 compare needs f32.
    tgt = targets.reshape(B, 1, L)

    TILE_L = _choose_tile_l(B, L, outs.dtype.itemsize)
    GL_total = pl.cdiv(L, TILE_L)
    # Second parallel grid axis so both v7x TensorCores are used; NPAR=1 when
    # there is only a single L block (harmless on v5e/v6e).
    NPAR = 2 if GL_total >= 2 else 1
    GL_inner = pl.cdiv(GL_total, NPAR)

    def lmap(n, l):
        # Overflow steps of the last chunk clamp to the final block; their
        # contribution is zeroed in-kernel via the pos < seq_len mask.
        return jnp.minimum(n * GL_inner + l, GL_total - 1)

    kernel = functools.partial(_complete_loss_kernel, tile_l=TILE_L,
                               gl_inner=GL_inner, seq_len=L)

    partials = pl.pallas_call(
        kernel,
        out_shape=jax.ShapeDtypeStruct((NPAR, 8, 128), jnp.float32),
        grid_spec=pltpu.PrefetchScalarGridSpec(
            num_scalar_prefetch=0,
            grid=(NPAR, GL_inner),
            in_specs=[
                pl.BlockSpec((B, 3, TILE_L), lambda n, l: (0, 0, lmap(n, l))),
                pl.BlockSpec((B, 1, TILE_L), lambda n, l: (0, 0, lmap(n, l))),
            ],
            out_specs=pl.BlockSpec((1, 8, 128), lambda n, l: (n, 0, 0)),
            scratch_shapes=[pltpu.SMEM((8,), jnp.float32)],
        ),
        compiler_params=pltpu.CompilerParams(
            dimension_semantics=("parallel", "arbitrary"),
            vmem_limit_bytes=32 * 1024 * 1024,
        ),
        cost_estimate=pl.CostEstimate(
            flops=40 * B * L,
            transcendentals=2 * B * L,
            bytes_accessed=B * L * (3 * outs.dtype.itemsize
                                    + tgt.dtype.itemsize) + NPAR * 8 * 128 * 4,
        ),
    )(outs, tgt)

    tot = jnp.sum(partials[:, :, 0], axis=0)  # (8,) global sums

    count = tot[3]
    # NOTE: division is intentionally unguarded — an all-ignored batch yields
    # NaN, matching torch's empty .mean() / all-ignored CrossEntropyLoss.
    segmentation_loss = tot[0] / count
    MSE = tot[1] / count
    MAE = tot[2] / count

    s11, sT, sP, sC = tot[4], tot[5], tot[6], tot[7]
    # TODO(synk): cell ordering (TN/FP/FN/TP) is a best-effort guess since
    # compute_confusion_matrix's source is not part of the reference.
    cm = jnp.stack([jnp.stack([sC - sT - sP + s11, sP - s11]),
                    jnp.stack([sT - s11, s11])])

    p0sq = p[0] ** 2
    p1sq = p[1] ** 2
    loss = (1.0 / (2.0 * p0sq)) * segmentation_loss + (1.0 / (2.0 * p1sq)) * MSE
    loss = loss + jnp.log(1.0 + p0sq + p1sq)

    return MAE, segmentation_loss, loss, cm, MSE


if __name__ == "__main__":
    B, C, L = 2, 3, 256  # 3 output heads (seg0, seg1, intensity)

    key = jax.random.PRNGKey(0)
    k_out, k_base, k_sel, _ = jax.random.split(key, 4)

    outputs = jax.random.normal(k_out, (B, C, L), dtype=jnp.float32)

    # Targets in (B, 1, L): mix of invalid (-10), ignore-marker (-0.099),
    # zeros (class 0) and positive intensities (class 1).
    base = jax.random.uniform(k_base, (B, 1, L), minval=0.1, maxval=2.0,
                              dtype=jnp.float32)
    sel = jax.random.uniform(k_sel, (B, 1, L), dtype=jnp.float32)
    targets = jnp.where(sel < 0.10, -10.0,
               jnp.where(sel < 0.20, -0.099,
                jnp.where(sel < 0.45, 0.0, base))).astype(jnp.float32)

    # Uncertainty-weighting parameters p (inputs to forward, not weights).
    p = jnp.array([1.0, 0.7], dtype=jnp.float32)

    MAE, seg_loss, loss, cm, MSE = complete_loss(p, outputs, targets)
    jax.block_until_ready((MAE, seg_loss, loss, cm, MSE))
    print("KERNEL_OK")
</pallas_src>

<mosaic_0001>
module attributes {stable_mosaic.version = 11 : i64} {
  func.func @_complete_loss_kernel(%arg0: i32, %arg1: i32, %arg2: memref<2x3x256xf32, #tpu.memory_space<vmem>>, %arg3: memref<2x1x256xf32, #tpu.memory_space<vmem>>, %arg4: memref<1x8x128xf32, #tpu.memory_space<vmem>>, %arg5: memref<8xf32, #tpu.memory_space<smem>>) attributes {dimension_semantics = [#tpu.dimension_semantics<parallel>, #tpu.dimension_semantics<arbitrary>], iteration_bounds = array<i64: 1, 1>, scalar_prefetch = 0 : i64, scratch_operands = 1 : i64, tpu.core_type = #tpu.core_type<tc>, window_params = [{transform_indices = @transform_0, window_bounds = array<i64: 2, 3, 256>}, {transform_indices = @transform_1, window_bounds = array<i64: 2, 1, 256>}, {transform_indices = @transform_2, window_bounds = array<i64: 1, 8, 128>}]} {
    %c0_i32 = arith.constant 0 : i32
    %0 = arith.cmpi eq, %arg1, %c0_i32 : i32
    %1 = arith.extui %0 : i1 to i32
    %c0_i32_0 = arith.constant 0 : i32
    %2 = arith.cmpi ne, %1, %c0_i32_0 : i32
    scf.if %2 {
      %cst_37 = arith.constant 0.000000e+00 : f32
      %c0_38 = arith.constant 0 : index
      %124 = memref.load %arg5[%c0_38] : memref<8xf32, #tpu.memory_space<smem>>
      memref.store %cst_37, %arg5[%c0_38] : memref<8xf32, #tpu.memory_space<smem>>
      %cst_39 = arith.constant 0.000000e+00 : f32
      %c1_40 = arith.constant 1 : index
      %125 = memref.load %arg5[%c1_40] : memref<8xf32, #tpu.memory_space<smem>>
      memref.store %cst_39, %arg5[%c1_40] : memref<8xf32, #tpu.memory_space<smem>>
      %cst_41 = arith.constant 0.000000e+00 : f32
      %c2_42 = arith.constant 2 : index
      %126 = memref.load %arg5[%c2_42] : memref<8xf32, #tpu.memory_space<smem>>
      memref.store %cst_41, %arg5[%c2_42] : memref<8xf32, #tpu.memory_space<smem>>
      %cst_43 = arith.constant 0.000000e+00 : f32
      %c3_44 = arith.constant 3 : index
      %127 = memref.load %arg5[%c3_44] : memref<8xf32, #tpu.memory_space<smem>>
      memref.store %cst_43, %arg5[%c3_44] : memref<8xf32, #tpu.memory_space<smem>>
      %cst_45 = arith.constant 0.000000e+00 : f32
      %c4_46 = arith.constant 4 : index
      %128 = memref.load %arg5[%c4_46] : memref<8xf32, #tpu.memory_space<smem>>
      memref.store %cst_45, %arg5[%c4_46] : memref<8xf32, #tpu.memory_space<smem>>
      %cst_47 = arith.constant 0.000000e+00 : f32
      %c5_48 = arith.constant 5 : index
      %129 = memref.load %arg5[%c5_48] : memref<8xf32, #tpu.memory_space<smem>>
      memref.store %cst_47, %arg5[%c5_48] : memref<8xf32, #tpu.memory_space<smem>>
      %cst_49 = arith.constant 0.000000e+00 : f32
      %c6_50 = arith.constant 6 : index
      %130 = memref.load %arg5[%c6_50] : memref<8xf32, #tpu.memory_space<smem>>
      memref.store %cst_49, %arg5[%c6_50] : memref<8xf32, #tpu.memory_space<smem>>
      %cst_51 = arith.constant 0.000000e+00 : f32
      %c7_52 = arith.constant 7 : index
      %131 = memref.load %arg5[%c7_52] : memref<8xf32, #tpu.memory_space<smem>>
      memref.store %cst_51, %arg5[%c7_52] : memref<8xf32, #tpu.memory_space<smem>>
    } else {
    }
    %c1_i32 = arith.constant 1 : i32
    %3 = arith.muli %arg0, %c1_i32 : i32
    %4 = arith.addi %3, %arg1 : i32
    %c256_i32 = arith.constant 256 : i32
    %5 = arith.muli %4, %c256_i32 : i32
    %c0 = arith.constant 0 : index
    %c0_1 = arith.constant 0 : index
    %c0_2 = arith.constant 0 : index
    %6 = vector.load %arg3[%c0, %c0_1, %c0_2] : memref<2x1x256xf32, #tpu.memory_space<vmem>>, vector<2x1x256xf32>
    %c0_3 = arith.constant 0 : index
    %c0_4 = arith.constant 0 : index
    %c0_5 = arith.constant 0 : index
    %7 = vector.load %arg2[%c0_3, %c0_4, %c0_5] : memref<2x3x256xf32, #tpu.memory_space<vmem>>, vector<2x3x256xf32>
    %8 = vector.extract_strided_slice %7 {offsets = [0, 0, 0], sizes = [2, 1, 256], strides = [1, 1, 1]} : vector<2x3x256xf32> to vector<2x1x256xf32>
    %9 = vector.extract_strided_slice %7 {offsets = [0, 1, 0], sizes = [2, 1, 256], strides = [1, 1, 1]} : vector<2x3x256xf32> to vector<2x1x256xf32>
    %10 = vector.extract_strided_slice %7 {offsets = [0, 2, 0], sizes = [2, 1, 256], strides = [1, 1, 1]} : vector<2x3x256xf32> to vector<2x1x256xf32>
    %11 = tpu.iota {dimensions = array<i32: 2>} : vector<2x1x256xi32>
    %c256_i32_6 = arith.constant 256 : i32
    %12 = arith.subi %c256_i32_6, %5 : i32
    %13 = vector.broadcast %12 : i32 to vector<2x1x256xi32>
    %14 = arith.cmpi slt, %11, %13 : vector<2x1x256xi32>
    %cst = arith.constant -1.000000e+01 : f32
    %15 = vector.broadcast %cst : f32 to vector<2x1x256xf32>
    %16 = arith.cmpf one, %6, %15 : vector<2x1x256xf32>
    %cst_7 = arith.constant -0.0989999994 : f32
    %17 = vector.broadcast %cst_7 : f32 to vector<2x1x256xf32>
    %18 = arith.cmpf one, %6, %17 : vector<2x1x256xf32>
    %19 = arith.andi %16, %18 : vector<2x1x256xi1>
    %20 = arith.andi %19, %14 : vector<2x1x256xi1>
    %cst_8 = arith.constant 0.000000e+00 : f32
    %21 = vector.broadcast %cst_8 : f32 to vector<2x1x256xf32>
    %22 = arith.cmpf ogt, %6, %21 : vector<2x1x256xf32>
    %23 = arith.subf %9, %8 : vector<2x1x256xf32>
    %24 = arith.subf %8, %9 : vector<2x1x256xf32>
    %25 = arith.select %22, %23, %24 : vector<2x1x256xi1>, vector<2x1x256xf32>
    %cst_9 = arith.constant 0.000000e+00 : f32
    %26 = vector.broadcast %cst_9 : f32 to vector<2x1x256xf32>
    %27 = arith.subf %26, %25 : vector<2x1x256xf32>
    %cst_10 = arith.constant 0.000000e+00 : f32
    %28 = vector.broadcast %cst_10 : f32 to vector<2x1x256xf32>
    %29 = arith.maximumf %27, %28 : vector<2x1x256xf32>
    %30 = math.absf %25 : vector<2x1x256xf32>
    %cst_11 = arith.constant 0.000000e+00 : f32
    %31 = vector.broadcast %cst_11 : f32 to vector<2x1x256xf32>
    %32 = arith.subf %31, %30 : vector<2x1x256xf32>
    %33 = math.exp %32 : vector<2x1x256xf32>
    %34 = math.log1p %33 : vector<2x1x256xf32>
    %35 = arith.addf %29, %34 : vector<2x1x256xf32>
    %cst_12 = arith.constant 0.000000e+00 : f32
    %36 = vector.broadcast %cst_12 : f32 to vector<2x1x256xf32>
    %37 = arith.select %20, %35, %36 : vector<2x1x256xi1>, vector<2x1x256xf32>
    %38 = arith.subf %10, %6 : vector<2x1x256xf32>
    %cst_13 = arith.constant 0.000000e+00 : f32
    %39 = vector.broadcast %cst_13 : f32 to vector<2x1x256xf32>
    %40 = arith.select %20, %38, %39 : vector<2x1x256xi1>, vector<2x1x256xf32>
    %41 = arith.mulf %40, %40 : vector<2x1x256xf32>
    %42 = math.absf %40 : vector<2x1x256xf32>
    %43 = arith.extui %20 : vector<2x1x256xi1> to vector<2x1x256xi32>
    %44 = arith.sitofp %43 : vector<2x1x256xi32> to vector<2x1x256xf32>
    %c48_i32 = arith.constant 48 : i32
    %45 = arith.subi %c48_i32, %5 : i32
    %46 = vector.broadcast %45 : i32 to vector<2x1x256xi32>
    %47 = arith.cmpi sge, %11, %46 : vector<2x1x256xi32>
    %c208_i32 = arith.constant 208 : i32
    %48 = arith.subi %c208_i32, %5 : i32
    %49 = vector.broadcast %48 : i32 to vector<2x1x256xi32>
    %50 = arith.cmpi slt, %11, %49 : vector<2x1x256xi32>
    %51 = arith.andi %47, %50 : vector<2x1x256xi1>
    %52 = arith.andi %20, %51 : vector<2x1x256xi1>
    %53 = arith.cmpf ogt, %9, %8 : vector<2x1x256xf32>
    %54 = arith.extui %52 : vector<2x1x256xi1> to vector<2x1x256xi32>
    %55 = arith.sitofp %54 : vector<2x1x256xi32> to vector<2x1x256xf32>
    %56 = arith.andi %52, %22 : vector<2x1x256xi1>
    %cst_14 = arith.constant 1.000000e+00 : f32
    %cst_15 = arith.constant 0.000000e+00 : f32
    %57 = vector.broadcast %cst_14 : f32 to vector<2x1x256xf32>
    %58 = vector.broadcast %cst_15 : f32 to vector<2x1x256xf32>
    %59 = arith.select %56, %57, %58 : vector<2x1x256xi1>, vector<2x1x256xf32>
    %60 = arith.andi %52, %53 : vector<2x1x256xi1>
    %cst_16 = arith.constant 1.000000e+00 : f32
    %cst_17 = arith.constant 0.000000e+00 : f32
    %61 = vector.broadcast %cst_16 : f32 to vector<2x1x256xf32>
    %62 = vector.broadcast %cst_17 : f32 to vector<2x1x256xf32>
    %63 = arith.select %60, %61, %62 : vector<2x1x256xi1>, vector<2x1x256xf32>
    %64 = arith.mulf %59, %63 : vector<2x1x256xf32>
    %c0_18 = arith.constant 0 : index
    %65 = memref.load %arg5[%c0_18] : memref<8xf32, #tpu.memory_space<smem>>
    %66 = vector.shape_cast %37 : vector<2x1x256xf32> to vector<1x2x1x256xf32>
    %cst_19 = arith.constant dense<0.000000e+00> : vector<1xf32>
    %67 = vector.multi_reduction <add>, %66, %cst_19 [1, 2, 3] : vector<1x2x1x256xf32> to vector<1xf32>
    %68 = vector.shape_cast %67 : vector<1xf32> to vector<1x1x1x1xf32>
    %69 = vector.extract %68[0, 0, 0, 0] : f32 from vector<1x1x1x1xf32>
    %70 = arith.addf %65, %69 : f32
    %c0_20 = arith.constant 0 : index
    %71 = memref.load %arg5[%c0_20] : memref<8xf32, #tpu.memory_space<smem>>
    memref.store %70, %arg5[%c0_20] : memref<8xf32, #tpu.memory_space<smem>>
    %c1 = arith.constant 1 : index
    %72 = memref.load %arg5[%c1] : memref<8xf32, #tpu.memory_space<smem>>
    %73 = vector.shape_cast %41 : vector<2x1x256xf32> to vector<1x2x1x256xf32>
    %cst_21 = arith.constant dense<0.000000e+00> : vector<1xf32>
    %74 = vector.multi_reduction <add>, %73, %cst_21 [1, 2, 3] : vector<1x2x1x256xf32> to vector<1xf32>
    %75 = vector.shape_cast %74 : vector<1xf32> to vector<1x1x1x1xf32>
    %76 = vector.extract %75[0, 0, 0, 0] : f32 from vector<1x1x1x1xf32>
    %77 = arith.addf %72, %76 : f32
    %c1_22 = arith.constant 1 : index
    %78 = memref.load %arg5[%c1_22] : memref<8xf32, #tpu.memory_space<smem>>
    memref.store %77, %arg5[%c1_22] : memref<8xf32, #tpu.memory_space<smem>>
    %c2 = arith.constant 2 : index
    %79 = memref.load %arg5[%c2] : memref<8xf32, #tpu.memory_space<smem>>
    %80 = vector.shape_cast %42 : vector<2x1x256xf32> to vector<1x2x1x256xf32>
    %cst_23 = arith.constant dense<0.000000e+00> : vector<1xf32>
    %81 = vector.multi_reduction <add>, %80, %cst_23 [1, 2, 3] : vector<1x2x1x256xf32> to vector<1xf32>
    %82 = vector.shape_cast %81 : vector<1xf32> to vector<1x1x1x1xf32>
    %83 = vector.extract %82[0, 0, 0, 0] : f32 from vector<1x1x1x1xf32>
    %84 = arith.addf %79, %83 : f32
    %c2_24 = arith.constant 2 : index
    %85 = memref.load %arg5[%c2_24] : memref<8xf32, #tpu.memory_space<smem>>
    memref.store %84, %arg5[%c2_24] : memref<8xf32, #tpu.memory_space<smem>>
    %c3 = arith.constant 3 : index
    %86 = memref.load %arg5[%c3] : memref<8xf32, #tpu.memory_space<smem>>
    %87 = vector.shape_cast %44 : vector<2x1x256xf32> to vector<1x2x1x256xf32>
    %cst_25 = arith.constant dense<0.000000e+00> : vector<1xf32>
    %88 = vector.multi_reduction <add>, %87, %cst_25 [1, 2, 3] : vector<1x2x1x256xf32> to vector<1xf32>
    %89 = vector.shape_cast %88 : vector<1xf32> to vector<1x1x1x1xf32>
    %90 = vector.extract %89[0, 0, 0, 0] : f32 from vector<1x1x1x1xf32>
    %91 = arith.addf %86, %90 : f32
    %c3_26 = arith.constant 3 : index
    %92 = memref.load %arg5[%c3_26] : memref<8xf32, #tpu.memory_space<smem>>
    memref.store %91, %arg5[%c3_26] : memref<8xf32, #tpu.memory_space<smem>>
    %c4 = arith.constant 4 : index
    %93 = memref.load %arg5[%c4] : memref<8xf32, #tpu.memory_space<smem>>
    %94 = vector.shape_cast %64 : vector<2x1x256xf32> to vector<1x2x1x256xf32>
    %cst_27 = arith.constant dense<0.000000e+00> : vector<1xf32>
    %95 = vector.multi_reduction <add>, %94, %cst_27 [1, 2, 3] : vector<1x2x1x256xf32> to vector<1xf32>
    %96 = vector.shape_cast %95 : vector<1xf32> to vector<1x1x1x1xf32>
    %97 = vector.extract %96[0, 0, 0, 0] : f32 from vector<1x1x1x1xf32>
    %98 = arith.addf %93, %97 : f32
    %c4_28 = arith.constant 4 : index
    %99 = memref.load %arg5[%c4_28] : memref<8xf32, #tpu.memory_space<smem>>
    memref.store %98, %arg5[%c4_28] : memref<8xf32, #tpu.memory_space<smem>>
    %c5 = arith.constant 5 : index
    %100 = memref.load %arg5[%c5] : memref<8xf32, #tpu.memory_space<smem>>
    %101 = vector.shape_cast %59 : vector<2x1x256xf32> to vector<1x2x1x256xf32>
    %cst_29 = arith.constant dense<0.000000e+00> : vector<1xf32>
    %102 = vector.multi_reduction <add>, %101, %cst_29 [1, 2, 3] : vector<1x2x1x256xf32> to vector<1xf32>
    %103 = vector.shape_cast %102 : vector<1xf32> to vector<1x1x1x1xf32>
    %104 = vector.extract %103[0, 0, 0, 0] : f32 from vector<1x1x1x1xf32>
    %105 = arith.addf %100, %104 : f32
    %c5_30 = arith.constant 5 : index
    %106 = memref.load %arg5[%c5_30] : memref<8xf32, #tpu.memory_space<smem>>
    memref.store %105, %arg5[%c5_30] : memref<8xf32, #tpu.memory_space<smem>>
    %c6 = arith.constant 6 : index
    %107 = memref.load %arg5[%c6] : memref<8xf32, #tpu.memory_space<smem>>
    %108 = vector.shape_cast %63 : vector<2x1x256xf32> to vector<1x2x1x256xf32>
    %cst_31 = arith.constant dense<0.000000e+00> : vector<1xf32>
    %109 = vector.multi_reduction <add>, %108, %cst_31 [1, 2, 3] : vector<1x2x1x256xf32> to vector<1xf32>
    %110 = vector.shape_cast %109 : vector<1xf32> to vector<1x1x1x1xf32>
    %111 = vector.extract %110[0, 0, 0, 0] : f32 from vector<1x1x1x1xf32>
    %112 = arith.addf %107, %111 : f32
    %c6_32 = arith.constant 6 : index
    %113 = memref.load %arg5[%c6_32] : memref<8xf32, #tpu.memory_space<smem>>
    memref.store %112, %arg5[%c6_32] : memref<8xf32, #tpu.memory_space<smem>>
    %c7 = arith.constant 7 : index
    %114 = memref.load %arg5[%c7] : memref<8xf32, #tpu.memory_space<smem>>
    %115 = vector.shape_cast %55 : vector<2x1x256xf32> to vector<1x2x1x256xf32>
    %cst_33 = arith.constant dense<0.000000e+00> : vector<1xf32>
    %116 = vector.multi_reduction <add>, %115, %cst_33 [1, 2, 3] : vector<1x2x1x256xf32> to vector<1xf32>
    %117 = vector.shape_cast %116 : vector<1xf32> to vector<1x1x1x1xf32>
    %118 = vector.extract %117[0, 0, 0, 0] : f32 from vector<1x1x1x1xf32>
    %119 = arith.addf %114, %118 : f32
    %c7_34 = arith.constant 7 : index
    %120 = memref.load %arg5[%c7_34] : memref<8xf32, #tpu.memory_space<smem>>
    memref.store %119, %arg5[%c7_34] : memref<8xf32, #tpu.memory_space<smem>>
    %c0_i32_35 = arith.constant 0 : i32
    %121 = arith.cmpi eq, %arg1, %c0_i32_35 : i32
    %122 = arith.extui %121 : i1 to i32
    %c0_i32_36 = arith.constant 0 : i32
    %123 = arith.cmpi ne, %122, %c0_i32_36 : i32
    scf.if %123 {
      %c0_37 = arith.constant 0 : index
      %124 = memref.load %arg5[%c0_37] : memref<8xf32, #tpu.memory_space<smem>>
      %125 = vector.broadcast %124 : f32 to vector<1x128xf32>
      %c1_38 = arith.constant 1 : index
      %126 = memref.load %arg5[%c1_38] : memref<8xf32, #tpu.memory_space<smem>>
      %127 = vector.broadcast %126 : f32 to vector<1x128xf32>
      %c2_39 = arith.constant 2 : index
      %128 = memref.load %arg5[%c2_39] : memref<8xf32, #tpu.memory_space<smem>>
      %129 = vector.broadcast %128 : f32 to vector<1x128xf32>
      %c3_40 = arith.constant 3 : index
      %130 = memref.load %arg5[%c3_40] : memref<8xf32, #tpu.memory_space<smem>>
      %131 = vector.broadcast %130 : f32 to vector<1x128xf32>
      %c4_41 = arith.constant 4 : index
      %132 = memref.load %arg5[%c4_41] : memref<8xf32, #tpu.memory_space<smem>>
      %133 = vector.broadcast %132 : f32 to vector<1x128xf32>
      %c5_42 = arith.constant 5 : index
      %134 = memref.load %arg5[%c5_42] : memref<8xf32, #tpu.memory_space<smem>>
      %135 = vector.broadcast %134 : f32 to vector<1x128xf32>
      %c6_43 = arith.constant 6 : index
      %136 = memref.load %arg5[%c6_43] : memref<8xf32, #tpu.memory_space<smem>>
      %137 = vector.broadcast %136 : f32 to vector<1x128xf32>
      %c7_44 = arith.constant 7 : index
      %138 = memref.load %arg5[%c7_44] : memref<8xf32, #tpu.memory_space<smem>>
      %139 = vector.broadcast %138 : f32 to vector<1x128xf32>
      %140 = tpu.concatenate %125, %127, %129, %131, %133, %135, %137, %139 in 0 : vector<1x128xf32>, vector<1x128xf32>, vector<1x128xf32>, vector<1x128xf32>, vector<1x128xf32>, vector<1x128xf32>, vector<1x128xf32>, vector<1x128xf32> -> vector<8x128xf32>
      %c0_45 = arith.constant 0 : index
      %c0_46 = arith.constant 0 : index
      %c0_47 = arith.constant 0 : index
      %141 = vector.load %arg4[%c0_45, %c0_46, %c0_47] : memref<1x8x128xf32, #tpu.memory_space<vmem>>, vector<1x8x128xf32>
      %142 = vector.shape_cast %141 : vector<1x8x128xf32> to vector<8x128xf32>
      %143 = vector.shape_cast %140 : vector<8x128xf32> to vector<1x8x128xf32>
      tpu.vector_store %arg4[%c0_45, %c0_46, %c0_47], %143 {strides = array<i32>} : memref<1x8x128xf32, #tpu.memory_space<vmem>>, vector<1x8x128xf32>,
    } else {
    }
    return
  }
  func.func @transform_0(%arg0: i32, %arg1: i32) -> (i32, i32, i32) {
    %c1_i32 = arith.constant 1 : i32
    %0 = arith.muli %arg0, %c1_i32 : i32
    %1 = arith.addi %0, %arg1 : i32
    %c0_i32 = arith.constant 0 : i32
    %2 = arith.minsi %1, %c0_i32 : i32
    %c0_i32_0 = arith.constant 0 : i32
    %c0_i32_1 = arith.constant 0 : i32
    %c0_i32_2 = arith.constant 0 : i32
    return %c0_i32_0, %c0_i32_1, %2 : i32, i32, i32
  }
  func.func @transform_1(%arg0: i32, %arg1: i32) -> (i32, i32, i32) {
    %c1_i32 = arith.constant 1 : i32
    %0 = arith.muli %arg0, %c1_i32 : i32
    %1 = arith.addi %0, %arg1 : i32
    %c0_i32 = arith.constant 0 : i32
    %2 = arith.minsi %1, %c0_i32 : i32
    %c0_i32_0 = arith.constant 0 : i32
    %c0_i32_1 = arith.constant 0 : i32
    %c0_i32_2 = arith.constant 0 : i32
    return %c0_i32_0, %c0_i32_1, %2 : i32, i32, i32
  }
  func.func @transform_2(%arg0: i32, %arg1: i32) -> (i32, i32, i32) {
    %c0_i32 = arith.constant 0 : i32
    %c0_i32_0 = arith.constant 0 : i32
    %c0_i32_1 = arith.constant 0 : i32
    return %arg0, %c0_i32, %c0_i32_0 : i32, i32, i32
  }
}

</mosaic_0001>

<llo_original>
// kernel: tpu_custom_call.1
$region0: #{tpu_custom_call.1}
  #allocation0 [shape = 'u32[]', space=smem, size = 0x4, offset = 0x4, fixed_abs, tag = 'smem constant byte address 0x4 - core index']
  #allocation1 [shape = 'u32[72,128]{1,0:T(1,128)}', space=vmem, size = 0x9000, scoped, tag = 'internal scratch']
  #allocation2 [shape = 'f32[8]{0:T(128)}', space=smem, size = 0x200, scoped, tag = 'scratch operand']
  %s0 = inlined_call_operand.vmem [shape: f32[2,3,256], index: 0, kind: input, shape index: {}]
  %s1 = inlined_call_operand.vmem [shape: f32[2,1,256], index: 1, kind: input, shape index: {}]
  %s2 = inlined_call_operand.hbm [shape: f32[1,8,128], index: 2, kind: output, shape index: {}]
  %s3 = sld [smem:[#allocation0]]
  $region26: #{tpu_custom_call.1} parent=0
    _
  %s5 = ssub.s32 1, %s3
  %s6 = scalar_select 0, %s5, %s3
  $region1: #{tpu_custom_call.1} parent=0
    #allocation3 [shape = 'u8[4096]{0}', space=vmem, size = 0x1000, scoped, tag = 'output window, operand 0, single buffered']
    #allocation4 [shape = 's32[1]{0}', space=sflag, size = 0x4, scoped, tag = 'scoped memory for tpu_custom_call.1']
    %7 = vsyncpa [#allocation4], 0
    // Predicated region
    $region2: #{tpu_custom_call.1} parent=1 // pred_check
      _
    $region3: #{tpu_custom_call.1} parent=1 // pred_check_branch
      %9 = sbr.rel (0) target = $region5
    $region4: #{tpu_custom_call.1} parent=1 // pred_region
      %s10 = sadd.s32 0, 0
      %p11 = scmp.lt.s32.totalorder %s10, 0
      %s12 = scalar_select %p11, %s10, 0
      %s13 = smul.u32 2, %s12
      %p14 = scmp.lt.s32.totalorder %s13, 1
      %s15 = scalar_select %p14, %s13, 1
      %s16 = smul.addr %s15, 4
      %s17 = scalar_lea.vmem %s0, %s16
      %s18 = sadd.s32 0, 0
      %p19 = scmp.lt.s32.totalorder %s18, 0
      %s20 = scalar_select %p19, %s18, 0
      %s21 = smul.u32 2, %s20
    $region5: #{tpu_custom_call.1} parent=1 // pred_fallthru
      _
    // Predicated region
    $region6: #{tpu_custom_call.1} parent=1 // pred_check
      _
    $region7: #{tpu_custom_call.1} parent=1 // pred_check_branch
      %23 = sbr.rel (0) target = $region9
    $region8: #{tpu_custom_call.1} parent=1 // pred_region
      %s24 = sadd.s32 0, 0
      %p25 = scmp.lt.s32.totalorder %s24, 0
      %s26 = scalar_select %p25, %s24, 0
      %s27 = smul.u32 2, %s26
      %p28 = scmp.lt.s32.totalorder %s27, 1
      %s29 = scalar_select %p28, %s27, 1
      %s30 = scalar_lea.vmem %s1, %s29
      %s31 = sadd.s32 0, 0
      %p32 = scmp.lt.s32.totalorder %s31, 0
      %s33 = scalar_select %p32, %s31, 0
      %s34 = smul.u32 2, %s33
    $region9: #{tpu_custom_call.1} parent=1 // pred_fallthru
      _
    %s35 = sadd.s32 0, 0
    %p36 = scmp.lt.s32.totalorder %s35, 0
    %s37 = scalar_select %p36, %s35, 0
    %s38 = smul.u32 2, %s37
    %p39 = scmp.lt.s32.totalorder %s38, 1
    %s40 = scalar_select %p39, %s38, 1
    %s41 = smul.addr %s40, 4
    %s42 = scalar_lea.vmem %s0, %s41
    %s43 = sadd.s32 0, 0
    %p44 = scmp.lt.s32.totalorder %s43, 0
    %s45 = scalar_select %p44, %s43, 0
    %s46 = smul.u32 2, %s45
    %p47 = scmp.lt.s32.totalorder %s46, 1
    %s48 = scalar_select %p47, %s46, 1
    %s49 = scalar_lea.vmem %s1, %s48
    %s50 = sadd.s32 0, 0
    %p51 = scmp.lt.s32.totalorder %s50, 0
    %s52 = scalar_select %p51, %s50, 0
    %s53 = smul.u32 2, %s52
    %p54 = scmp.lt.s32.totalorder %s53, 1
    %s55 = scalar_select %p54, %s53, 1
    %s56 = smul.addr %s55, 4
    %s57 = scalar_lea.vmem %s0, %s56
    %s58 = sadd.s32 0, 0
    %p59 = scmp.lt.s32.totalorder %s58, 0
    %s60 = scalar_select %p59, %s58, 0
    %s61 = smul.u32 2, %s60
    %s62 = sadd.s32 0, 0
    %p63 = scmp.lt.s32.totalorder %s62, 0
    %s64 = scalar_select %p63, %s62, 0
    %s65 = smul.u32 2, %s64
    %p66 = scmp.lt.s32.totalorder %s65, 1
    %s67 = scalar_select %p66, %s65, 1
    %s68 = scalar_lea.vmem %s1, %s67
    %s69 = sadd.s32 0, 0
    %p70 = scmp.lt.s32.totalorder %s69, 0
    %s71 = scalar_select %p70, %s69, 0
    %s72 = smul.u32 2, %s71
    %p73 = scmp.eq.s32.totalorder 0, 0
    // Predicated region
    $region10: #{tpu_custom_call.1} parent=1 // pred_check
      %p74 = pneg %p73
    $region11: #{tpu_custom_call.1} parent=1 // pred_check_branch
      %76 = sbr.rel (%p74) target = $region13
    $region12: #{tpu_custom_call.1} parent=1 // pred_region
      %s77 = scalar_lea.smem [#allocation2], 0
      %78 = sst [smem:[%s77]] 0.0
      %s79 = scalar_lea.smem [#allocation2], 1
      %80 = sst [smem:[%s79]] 0.0
      %s81 = scalar_lea.smem [#allocation2], 2
      %82 = sst [smem:[%s81]] 0.0
      %s83 = scalar_lea.smem [#allocation2], 3
      %84 = sst [smem:[%s83]] 0.0
      %s85 = scalar_lea.smem [#allocation2], 4
      %86 = sst [smem:[%s85]] 0.0
      %s87 = scalar_lea.smem [#allocation2], 5
      %88 = sst [smem:[%s87]] 0.0
      %s89 = scalar_lea.smem [#allocation2], 6
      %90 = sst [smem:[%s89]] 0.0
      %s91 = scalar_lea.smem [#allocation2], 7
      %92 = sst [smem:[%s91]] 0.0
    $region13: #{tpu_custom_call.1} parent=1 // pred_fallthru
      _
    %s93 = sadd.s32 0, 0
    %s94 = smul.u32 %s93, 256
    %v95 = vld [vmem:[%s68] sm:$0x3]
    %v96 = vld [vmem:[%s68 + $0x2] sm:$0x3]
    %v97 = vld [vmem:[%s57] sm:$0x77]
    %v98 = vld [vmem:[%s57 + $0x8] sm:$0x77]
    %v99 = vlaneseq
    %v100 = vand.u32 %v99, 127
    %v101 = vadd.s32 %v100, 128
    %s102 = ssub.s32 256, %s94
    %v103 = vstv %s102
    %vm104 = vcmp.lt.s32.totalorder %v100, %v103
    %vm105 = vcmp.lt.s32.totalorder %v101, %v103
    %vm106 = vcmp.ne.f32.partialorder %v95, -10.0
    %vm107 = vcmp.ne.f32.partialorder %v96, -10.0
    %vm108 = vcmp.ne.f32.partialorder %v95, -0.099
    %vm109 = vcmp.ne.f32.partialorder %v96, -0.099
    %vm110 = vmand %vm106, %vm108
    %vm111 = vmand %vm107, %vm109
    %v112 = vsel %vm104, 1, 0
    %v113 = vsel %vm105, 1, 0
    %v114 = vrot.slane %v113, 7
    %vm115 = vcmask 1040384
    %v116 = vsel %vm115, %v112, %v114
    %vm117 = vcmp.ne.s32.totalorder %v116, 0
    %vm118 = vmand %vm110, %vm117
    %vm119 = vmand %vm111, %vm117
    %vm120 = vcmp.gt.f32.partialorder %v95, 0.0
    %vm121 = vcmp.gt.f32.partialorder %v96, 0.0
    %v124 = vrot.slane %v97, 7
    %v125 = vrot.slane %v98, 7
    %v128 = vsub.f32 %v97, %v124
    %v129 = vsub.f32 %v98, %v125
    %v130 = vrot.slane %v97, 5
    %v131 = vrot.slane %v130, 4
    %v132 = vrot.slane %v98, 5
    %v133 = vrot.slane %v132, 4
    %v136 = vsub.f32 %v97, %v131
    %v137 = vsub.f32 %v98, %v133
    %140 = vst [vmem:[#allocation1] sm:$0xff] %v128
    %s141 = scalar_lea.vmem [#allocation1], 1
    %v142 = vld [vmem:[%s141] ss:$4 sm:$0xff]
    %143 = vst [vmem:[#allocation1 + $0x20] sm:$0xff] %v129
    %s144 = scalar_lea.vmem [#allocation1], 33
    %v145 = vld [vmem:[%s144] ss:$4 sm:$0xff]
    %v150 = vrot.slane %v136, 3
    %v151 = vrot.slane %v137, 3
    %v152 = vsel %vm115, %v136, %v150
    %v153 = vsel %vm115, %v137, %v151
    %v156 = vsel %vm120, %v142, %v152
    %v157 = vsel %vm121, %v145, %v153
    %v158 = vsub.f32 0.0, %v156
    %v159 = vsub.f32 0.0, %v157
    %v160 = vmax.f32 %v158, 0.0
    %v161 = vmax.f32 %v159, 0.0
    %v162 = vand.u32 2147483647, %v156
    %v163 = vand.u32 2147483647, %v157
    %v164 = vsub.f32 0.0, %v162
    %v165 = vsub.f32 0.0, %v163
    %v166 = vmul.f32 %v164, 1.442695
    %v167 = vpow.pop %v166
    %v168 = vmul.f32 %v165, 1.442695
    %v169 = vpow.pop %v168
    %v170 = vadd.f32 %v167, 1.0
    %v171 = vlog2.pop %v170
    %v172 = vmul.f32 %v171, 0.6931472
    %v173 = vmul.f32 -0.5, %v167
    %v174 = vadd.f32 %v173, 1.0
    %v175 = vmul.f32 %v174, %v167
    %v176 = vand.u32 2147483647, %v167
    %vm177 = vcmp.lt.f32.partialorder %v176, 0.0004427343
    %v178 = vsel %vm177, %v175, %v172
    %v179 = vadd.f32 %v169, 1.0
    %v180 = vlog2.pop %v179
    %v181 = vmul.f32 %v180, 0.6931472
    %v182 = vmul.f32 -0.5, %v169
    %v183 = vadd.f32 %v182, 1.0
    %v184 = vmul.f32 %v183, %v169
    %v185 = vand.u32 2147483647, %v169
    %vm186 = vcmp.lt.f32.partialorder %v185, 0.0004427343
    %v187 = vsel %vm186, %v184, %v181
    %v188 = vadd.f32 %v160, %v178
    %v189 = vadd.f32 %v161, %v187
    %v190 = vsel %vm118, %v188, 0.0
    %v191 = vsel %vm119, %v189, 0.0
    %v195 = vunpack.c.l.s4 286326784
    %v196 = vunpack.c.0.s8 %v195
    %v197 = vperm.slane %v95, %v196
    %v199 = vunpack.c.l.s4 286326784
    %v200 = vunpack.c.0.s8 %v199
    %v201 = vperm.slane %v96, %v200
    %v204 = vsub.f32 %v97, %v197
    %v205 = vsub.f32 %v98, %v201
    %208 = vst [vmem:[#allocation1] sm:$0xff] %v204
    %s209 = scalar_lea.vmem [#allocation1], 2
    %v210 = vld [vmem:[%s209] ss:$4 sm:$0xff]
    %211 = vst [vmem:[#allocation1 + $0x20] sm:$0xff] %v205
    %s212 = scalar_lea.vmem [#allocation1], 34
    %v213 = vld [vmem:[%s212] ss:$4 sm:$0xff]
    %v216 = vsel %vm118, %v210, 0.0
    %v217 = vsel %vm119, %v213, 0.0
    %v218 = vmul.f32 %v216, %v216
    %v219 = vmul.f32 %v217, %v217
    %v220 = vand.u32 2147483647, %v216
    %v221 = vand.u32 2147483647, %v217
    %v222 = vsel %vm118, 1, 0
    %v223 = vsel %vm119, 1, 0
    %v224 = vcvt.s32.f32 %v222
    %v225 = vcvt.s32.f32 %v223
    %s226 = ssub.s32 48, %s94
    %v227 = vstv %s226
    %vm228 = vcmp.ge.s32.totalorder %v100, %v227
    %vm229 = vcmp.ge.s32.totalorder %v101, %v227
    %s230 = ssub.s32 208, %s94
    %v231 = vstv %s230
    %vm232 = vcmp.lt.s32.totalorder %v100, %v231
    %vm233 = vcmp.lt.s32.totalorder %v101, %v231
    %vm234 = vmand %vm228, %vm232
    %vm235 = vmand %vm229, %vm233
    %v236 = vsel %vm234, 1, 0
    %v237 = vsel %vm235, 1, 0
    %v238 = vrot.slane %v237, 7
    %v239 = vsel %vm115, %v236, %v238
    %vm240 = vcmp.ne.s32.totalorder %v239, 0
    %vm241 = vmand %vm118, %vm240
    %vm242 = vmand %vm119, %vm240
    %vm243 = vcmp.gt.f32.partialorder %v97, %v124
    %vm244 = vcmp.gt.f32.partialorder %v98, %v125
    %v245 = vsel %vm241, 1, 0
    %v246 = vsel %vm242, 1, 0
    %v247 = vcvt.s32.f32 %v245
    %v248 = vcvt.s32.f32 %v246
    %vm249 = vmand %vm241, %vm120
    %vm250 = vmand %vm242, %vm121
    %v251 = vsel %vm249, 1.0, 0.0
    %v252 = vsel %vm250, 1.0, 0.0
    %v253 = vsel %vm243, 1, 0
    %v254 = vsel %vm244, 1, 0
    %255 = vst [vmem:[#allocation1] sm:$0xff] %v253
    %s256 = scalar_lea.vmem [#allocation1], 1
    %v257 = vld [vmem:[%s256] ss:$4 sm:$0xff]
    %258 = vst [vmem:[#allocation1 + $0x20] sm:$0xff] %v254
    %s259 = scalar_lea.vmem [#allocation1], 33
    %v260 = vld [vmem:[%s259] ss:$4 sm:$0xff]
    %vm261 = vcmp.ne.s32.totalorder %v257, 0
    %vm262 = vcmp.ne.s32.totalorder %v260, 0
    %vm263 = vmand %vm241, %vm261
    %vm264 = vmand %vm242, %vm262
    %v265 = vsel %vm263, 1.0, 0.0
    %v266 = vsel %vm264, 1.0, 0.0
    %v267 = vmul.f32 %v251, %v265
    %v268 = vmul.f32 %v252, %v266
    %s269 = sld [smem:[#allocation2]]
    %v272 = vperm.slane %v190, 0
    %v273 = vperm.slane %v190, 1
    %v274 = vperm.slane %v191, 0
    %v275 = vperm.slane %v191, 1
    %v280 = vsel %vm115, %v272, 0.0
    %v281 = vsel %vm115, %v273, 0.0
    %v282 = vadd.f32 %v280, %v281
    %v283 = vsel %vm115, %v274, 0.0
    %v284 = vadd.f32 %v282, %v283
    %v285 = vsel %vm115, %v275, 0.0
    %v286 = vadd.f32 %v284, %v285
    %287 = vadd.xlane.f32.xlu0 %v286
    %v288 = vpop.xlane.xlu0 %287
    %v289 = vrot.slane %v288, 4
    %v290 = vadd.f32 %v288, %v289
    %v291 = vrot.slane %v290, 2
    %v292 = vadd.f32 %v290, %v291
    %v293 = vrot.slane %v292, 1
    %v294 = vadd.f32 %v292, %v293
    %s295 = vtos %v294
    %s296 = sadd.f32 %s269, %s295
    %s297 = scalar_lea.smem [#allocation2], 0
    %298 = sst [smem:[%s297]] %s296
    %s299 = sld [smem:[#allocation2 + $0x1]]
    %v302 = vperm.slane %v218, 0
    %v303 = vperm.slane %v218, 1
    %v304 = vperm.slane %v219, 0
    %v305 = vperm.slane %v219, 1
    %v310 = vsel %vm115, %v302, 0.0
    %v311 = vsel %vm115, %v303, 0.0
    %v312 = vadd.f32 %v310, %v311
    %v313 = vsel %vm115, %v304, 0.0
    %v314 = vadd.f32 %v312, %v313
    %v315 = vsel %vm115, %v305, 0.0
    %v316 = vadd.f32 %v314, %v315
    %317 = vadd.xlane.f32.xlu0 %v316
    %v318 = vpop.xlane.xlu0 %317
    %v319 = vrot.slane %v318, 4
    %v320 = vadd.f32 %v318, %v319
    %v321 = vrot.slane %v320, 2
    %v322 = vadd.f32 %v320, %v321
    %v323 = vrot.slane %v322, 1
    %v324 = vadd.f32 %v322, %v323
    %s325 = vtos %v324
    %s326 = sadd.f32 %s299, %s325
    %s327 = scalar_lea.smem [#allocation2], 1
    %328 = sst [smem:[%s327]] %s326
    %s329 = sld [smem:[#allocation2 + $0x2]]
    %v332 = vperm.slane %v220, 0
    %v333 = vperm.slane %v220, 1
    %v334 = vperm.slane %v221, 0
    %v335 = vperm.slane %v221, 1
    %v340 = vsel %vm115, %v332, 0.0
    %v341 = vsel %vm115, %v333, 0.0
    %v342 = vadd.f32 %v340, %v341
    %v343 = vsel %vm115, %v334, 0.0
    %v344 = vadd.f32 %v342, %v343
    %v345 = vsel %vm115, %v335, 0.0
    %v346 = vadd.f32 %v344, %v345
    %347 = vadd.xlane.f32.xlu0 %v346
    %v348 = vpop.xlane.xlu0 %347
    %v349 = vrot.slane %v348, 4
    %v350 = vadd.f32 %v348, %v349
    %v351 = vrot.slane %v350, 2
    %v352 = vadd.f32 %v350, %v351
    %v353 = vrot.slane %v352, 1
    %v354 = vadd.f32 %v352, %v353
    %s355 = vtos %v354
    %s356 = sadd.f32 %s329, %s355
    %s357 = scalar_lea.smem [#allocation2], 2
    %358 = sst [smem:[%s357]] %s356
    %s359 = sld [smem:[#allocation2 + $0x3]]
    %v362 = vperm.slane %v224, 0
    %v363 = vperm.slane %v224, 1
    %v364 = vperm.slane %v225, 0
    %v365 = vperm.slane %v225, 1
    %v370 = vsel %vm115, %v362, 0.0
    %v371 = vsel %vm115, %v363, 0.0
    %v372 = vadd.f32 %v370, %v371
    %v373 = vsel %vm115, %v364, 0.0
    %v374 = vadd.f32 %v372, %v373
    %v375 = vsel %vm115, %v365, 0.0
    %v376 = vadd.f32 %v374, %v375
    %377 = vadd.xlane.f32.xlu0 %v376
    %v378 = vpop.xlane.xlu0 %377
    %v379 = vrot.slane %v378, 4
    %v380 = vadd.f32 %v378, %v379
    %v381 = vrot.slane %v380, 2
    %v382 = vadd.f32 %v380, %v381
    %v383 = vrot.slane %v382, 1
    %v384 = vadd.f32 %v382, %v383
    %s385 = vtos %v384
    %s386 = sadd.f32 %s359, %s385
    %s387 = scalar_lea.smem [#allocation2], 3
    %388 = sst [smem:[%s387]] %s386
    %s389 = sld [smem:[#allocation2 + $0x4]]
    %v392 = vperm.slane %v267, 0
    %v393 = vperm.slane %v267, 1
    %v394 = vperm.slane %v268, 0
    %v395 = vperm.slane %v268, 1
    %v400 = vsel %vm115, %v392, 0.0
    %v401 = vsel %vm115, %v393, 0.0
    %v402 = vadd.f32 %v400, %v401
    %v403 = vsel %vm115, %v394, 0.0
    %v404 = vadd.f32 %v402, %v403
    %v405 = vsel %vm115, %v395, 0.0
    %v406 = vadd.f32 %v404, %v405
    %407 = vadd.xlane.f32.xlu0 %v406
    %v408 = vpop.xlane.xlu0 %407
    %v409 = vrot.slane %v408, 4
    %v410 = vadd.f32 %v408, %v409
    %v411 = vrot.slane %v410, 2
    %v412 = vadd.f32 %v410, %v411
    %v413 = vrot.slane %v412, 1
    %v414 = vadd.f32 %v412, %v413
    %s415 = vtos %v414
    %s416 = sadd.f32 %s389, %s415
    %s417 = scalar_lea.smem [#allocation2], 4
    %418 = sst [smem:[%s417]] %s416
    %s419 = sld [smem:[#allocation2 + $0x5]]
    %v422 = vperm.slane %v251, 0
    %v423 = vperm.slane %v251, 1
    %v424 = vperm.slane %v252, 0
    %v425 = vperm.slane %v252, 1
    %v430 = vsel %vm115, %v422, 0.0
    %v431 = vsel %vm115, %v423, 0.0
    %v432 = vadd.f32 %v430, %v431
    %v433 = vsel %vm115, %v424, 0.0
    %v434 = vadd.f32 %v432, %v433
    %v435 = vsel %vm115, %v425, 0.0
    %v436 = vadd.f32 %v434, %v435
    %437 = vadd.xlane.f32.xlu0 %v436
    %v438 = vpop.xlane.xlu0 %437
    %v439 = vrot.slane %v438, 4
    %v440 = vadd.f32 %v438, %v439
    %v441 = vrot.slane %v440, 2
    %v442 = vadd.f32 %v440, %v441
    %v443 = vrot.slane %v442, 1
    %v444 = vadd.f32 %v442, %v443
    %s445 = vtos %v444
    %s446 = sadd.f32 %s419, %s445
    %s447 = scalar_lea.smem [#allocation2], 5
    %448 = sst [smem:[%s447]] %s446
    %s449 = sld [smem:[#allocation2 + $0x6]]
    %v452 = vperm.slane %v265, 0
    %v453 = vperm.slane %v265, 1
    %v454 = vperm.slane %v266, 0
    %v455 = vperm.slane %v266, 1
    %v460 = vsel %vm115, %v452, 0.0
    %v461 = vsel %vm115, %v453, 0.0
    %v462 = vadd.f32 %v460, %v461
    %v463 = vsel %vm115, %v454, 0.0
    %v464 = vadd.f32 %v462, %v463
    %v465 = vsel %vm115, %v455, 0.0
    %v466 = vadd.f32 %v464, %v465
    %467 = vadd.xlane.f32.xlu0 %v466
    %v468 = vpop.xlane.xlu0 %467
    %v469 = vrot.slane %v468, 4
    %v470 = vadd.f32 %v468, %v469
    %v471 = vrot.slane %v470, 2
    %v472 = vadd.f32 %v470, %v471
    %v473 = vrot.slane %v472, 1
    %v474 = vadd.f32 %v472, %v473
    %s475 = vtos %v474
    %s476 = sadd.f32 %s449, %s475
    %s477 = scalar_lea.smem [#allocation2], 6
    %478 = sst [smem:[%s477]] %s476
    %s479 = sld [smem:[#allocation2 + $0x7]]
    %v482 = vperm.slane %v247, 0
    %v483 = vperm.slane %v247, 1
    %v484 = vperm.slane %v248, 0
    %v485 = vperm.slane %v248, 1
    %v490 = vsel %vm115, %v482, 0.0
    %v491 = vsel %vm115, %v483, 0.0
    %v492 = vadd.f32 %v490, %v491
    %v493 = vsel %vm115, %v484, 0.0
    %v494 = vadd.f32 %v492, %v493
    %v495 = vsel %vm115, %v485, 0.0
    %v496 = vadd.f32 %v494, %v495
    %497 = vadd.xlane.f32.xlu0 %v496
    %v498 = vpop.xlane.xlu0 %497
    %v499 = vrot.slane %v498, 4
    %v500 = vadd.f32 %v498, %v499
    %v501 = vrot.slane %v500, 2
    %v502 = vadd.f32 %v500, %v501
    %v503 = vrot.slane %v502, 1
    %v504 = vadd.f32 %v502, %v503
    %s505 = vtos %v504
    %s506 = sadd.f32 %s479, %s505
    %s507 = scalar_lea.smem [#allocation2], 7
    %508 = sst [smem:[%s507]] %s506
    // Predicated region
    $region14: #{tpu_custom_call.1} parent=1 // pred_check
      %p509 = pneg %p73
    $region15: #{tpu_custom_call.1} parent=1 // pred_check_branch
      %511 = sbr.rel (%p509) target = $region17
    $region16: #{tpu_custom_call.1} parent=1 // pred_region
      %s512 = sld [smem:[#allocation2]]
      %v513 = vstv %s512
      %s514 = sld [smem:[#allocation2 + $0x1]]
      %v515 = vstv %s514
      %s516 = sld [smem:[#allocation2 + $0x2]]
      %v517 = vstv %s516
      %s518 = sld [smem:[#allocation2 + $0x3]]
      %v519 = vstv %s518
      %s520 = sld [smem:[#allocation2 + $0x4]]
      %v521 = vstv %s520
      %s522 = sld [smem:[#allocation2 + $0x5]]
      %v523 = vstv %s522
      %s524 = sld [smem:[#allocation2 + $0x6]]
      %v525 = vstv %s524
      %s526 = sld [smem:[#allocation2 + $0x7]]
      %v527 = vstv %s526
      %v528 = vsel %vm115, %v513, %v515
      %vm529 = vcmask 1041408
      %v530 = vsel %vm529, %v528, %v517
      %vm531 = vcmask 1042432
      %v532 = vsel %vm531, %v530, %v519
      %vm533 = vcmask 1043456
      %v534 = vsel %vm533, %v532, %v521
      %vm535 = vcmask 1044480
      %v536 = vsel %vm535, %v534, %v523
      %vm537 = vcmask 1045504
      %v538 = vsel %vm537, %v536, %v525
      %vm539 = vcmask 1046528
      %v540 = vsel %vm539, %v538, %v527
      %541 = vst [vmem:[#allocation3] sm:$0xff] %v540
    $region17: #{tpu_custom_call.1} parent=1 // pred_fallthru
      _
    // Predicated region
    $region18: #{tpu_custom_call.1} parent=1 // pred_check
      _
    $region19: #{tpu_custom_call.1} parent=1 // pred_check_branch
      %543 = sbr.rel (0) target = $region21
    $region20: #{tpu_custom_call.1} parent=1 // pred_region
      %545 = vsyncadd [#allocation4], 0
      %s547 = sshll.u32 [#allocation3], 4
      %s548 = int_to_ptr.vmem [resolvable:$true] %s547
      %s549 = sshll.u32 %s2, 4
      %s550 = int_to_ptr.hbm [resolvable:$true] %s549
      %552 = dma.vmem_to_hbm [thread:$0]  %s548, 128, %s550, [#allocation4]
    $region21: #{tpu_custom_call.1} parent=1 // pred_fallthru
      _
    // Predicated region
    $region22: #{tpu_custom_call.1} parent=1 // pred_check
      _
    $region23: #{tpu_custom_call.1} parent=1 // pred_check_branch
      %554 = sbr.rel (0) target = $region25
    $region24: #{tpu_custom_call.1} parent=1 // pred_region
      %556 = dma.done [#allocation4], 128
    $region25: #{tpu_custom_call.1} parent=1 // pred_fallthru
      _
    %557 = vsyncpa [#allocation4], 1

</llo_original>
